<compile_context>
chip_gen: v7x
topology: tpu7x:2x2x1
jax: 0.10.0
libtpu: 0.0.40
codegen_flags: <defaults>
</compile_context>

<pallas_src>
import math
import numpy as np
import jax
import jax.numpy as jnp
from jax.experimental import pallas as pl
from jax.experimental.pallas import tpu as pltpu


def _round_up(x, m):
    return ((x + m - 1) // m) * m


def _pick_batch_block(B, per_batch_bytes, budget=2 << 20):
    """Largest divisor of B that fits the VMEM budget; prefer keeping grid >= 2."""
    divs = [d for d in range(1, B + 1)
            if B % d == 0 and d * per_batch_bytes <= budget]
    if not divs:
        return 1
    two_plus = [d for d in divs if B // d >= 2]
    return max(two_plus) if two_plus else max(divs)


def _make_istft_kernel(t, hop, R, Bb, tpad, Kp, N):
    """t: #frames carrying data, R = n_fft // hop (overlap factor, assumed even)."""

    def kernel(x_ref, bw_ref, ienv_ref, out_ref):
        # x_ref   : (Bb, tpad, Kp) bf16 -- per batch: [R//2 zero rows | t frames | zero
        #                                  tail], Re|Im stacked along K, zero-padded
        # bw_ref  : (Kp, N)        bf16 -- window-folded cos/sin inverse real-DFT basis
        # ienv_ref: (t, hop)       f32  -- reciprocal OLA window envelope (kept region)
        # out_ref : (Bb, t, hop)   f32
        #
        # Fold the batch block into the M axis (layout-preserving: tpad is a multiple
        # of the bf16 sublane tile) and run ONE fused MXU matmul (inverse rDFT +
        # window), accumulating in f32.
        x2 = x_ref[...].reshape(Bb * tpad, Kp)
        y = jnp.dot(x2, bw_ref[...], preferred_element_type=jnp.float32)
        y3 = y.reshape(Bb, tpad, N)        # split of the sublane-major axis: free

        # Fused overlap-add + center trim: trimmed hop-block j' accumulates
        #   y3[:, j' + R - r, r*hop:(r+1)*hop]  for r = 0..R-1,
        # where out-of-range frame indices land on the zero-padded rows.
        # Static slices of the value `y3` (sublane shifts on the XLU); the sums run on
        # the VPU and one aligned store writes the finished tile.
        acc = y3[:, R:R + t, 0:hop]
        for r in range(1, R):
            a = R - r
            acc = acc + y3[:, a:a + t, r * hop:(r + 1) * hop]
        out_ref[...] = acc * ienv_ref[...][None]

    return kernel


def istft_pallas(x, n_fft, hop, window):
    """x: complex64 of shape (*sh, t, f) with f == n_fft//2 + 1.
    Returns float32 of shape (*sh, hop*t) (or (1, hop*t) for 2-D input),
    matching Istft.forward (torch.istft, normalized=True, center=True)."""
    assert n_fft % 2 == 0, "onesided ISTFT kernel assumes even n_fft"
    assert n_fft % hop == 0, "kernel assumes hop divides n_fft"
    R = n_fft // hop
    assert R % 2 == 0, "fused center-trim works at hop-block granularity (n_fft//hop even)"

    t, f = int(x.shape[-2]), int(x.shape[-1])
    assert f == n_fft // 2 + 1, "freq dim must be n_fft//2 + 1"
    sh = x.shape[:-2]
    B = int(np.prod(sh)) if len(sh) else 1

    N = n_fft
    lead = R // 2                       # center=True trims n_fft//2 = lead hop-blocks
    tpad = _round_up(t + R, 16)         # rows: [lead zeros | t frames | zero tail];
                                        # multiple of 16 -> bf16-tile-aligned batch fold
    Kp = _round_up(2 * f, 16)           # contraction dim (Re|Im stacked), bf16 aligned

    # batch entries folded per grid step (amortize per-step overhead, bigger matmul)
    per_batch_bytes = tpad * Kp * 2 + tpad * N * 4 + t * hop * 4
    Bb = _pick_batch_block(B, per_batch_bytes)

    # ---------------- spectrum -> (B, tpad, Kp) bf16 ----------------
    xr = jnp.real(x).reshape(B, t, f)
    xi = jnp.imag(x).reshape(B, t, f)
    xcat = jnp.concatenate([xr, xi], axis=-1).astype(jnp.bfloat16)          # (B, t, 2f)
    xcat = jnp.pad(xcat, ((0, 0), (lead, tpad - t - lead), (0, Kp - 2 * f)))

    # ---------------- window-folded inverse-rDFT basis (host, once) ----------------
    win = np.asarray(window, dtype=np.float64).reshape(N)
    k = np.arange(f, dtype=np.float64)[:, None]
    n = np.arange(N, dtype=np.float64)[None, :]
    theta = 2.0 * np.pi * k * n / N
    coef = np.where((k == 0) | (k == N // 2), 1.0, 2.0)   # half-complex C2R weights
    scale = 1.0 / math.sqrt(N)          # irfft's 1/N times sqrt(N) for normalized=True
    basis = np.zeros((Kp, N), dtype=np.float32)
    basis[:f] = (coef * np.cos(theta) * scale) * win[None, :]
    basis[f:2 * f] = (-coef * np.sin(theta) * scale) * win[None, :]
    bw = jnp.asarray(basis, dtype=jnp.bfloat16)

    # ---------------- reciprocal OLA window envelope (trimmed region) ----------------
    n_frames = t + 1                    # F.pad(..., (0,1)) appends one zero frame
    wsq = win ** 2
    env = np.zeros((t + R, hop), dtype=np.float64)
    for r in range(R):
        env[r:r + n_frames, :] += wsq[r * hop:(r + 1) * hop][None, :]
    env = env[lead:lead + t]            # keep only the non-trimmed hop-blocks
    # TODO(synk): torch.istft raises on NOLA violation / zero envelope; here we use a
    # guarded reciprocal instead (kept region of sane windows is strictly positive).
    inv_env = np.where(env > 1e-11, 1.0 / np.maximum(env, 1e-30), 0.0)
    ienv = jnp.asarray(inv_env, dtype=jnp.float32)

    kernel = _make_istft_kernel(t, hop, R, Bb, tpad, Kp, N)

    out = pl.pallas_call(
        kernel,
        out_shape=jax.ShapeDtypeStruct((B, t, hop), jnp.float32),
        grid_spec=pltpu.PrefetchScalarGridSpec(
            num_scalar_prefetch=0,
            grid=(B // Bb,),
            in_specs=[
                pl.BlockSpec((Bb, tpad, Kp), lambda b: (b, 0, 0)),   # spectrum frames
                # Grid-invariant inputs (constant index_map) are fetched once by the
                # pipeline.  NOTE: for very large n_fft, single-buffer them
                # (pipeline_mode=pl.Buffered(1)) and tile the frame axis to bound VMEM.
                pl.BlockSpec((Kp, N), lambda b: (0, 0)),             # fused basis
                pl.BlockSpec((t, hop), lambda b: (0, 0)),            # 1 / envelope
            ],
            out_specs=pl.BlockSpec((Bb, t, hop), lambda b: (b, 0, 0)),
        ),
        compiler_params=pltpu.CompilerParams(dimension_semantics=("parallel",)),
    )(xcat, bw, ienv)

    y = out.reshape(B, t * hop)         # free reshape; trim already done in-kernel
    if x.ndim > 2:
        return y.reshape(*sh, hop * t)
    return y                            # 2-D input: torch keeps (1, L)


class Istft:
    """Mirror of the PyTorch module."""

    def __init__(self, n_fft_inv, hop_inv, window_inv):
        self.n_fft_inv = int(n_fft_inv)
        self.hop_inv = int(hop_inv)
        self.w_inv = jnp.asarray(window_inv, dtype=jnp.float32)

    def __call__(self, x):
        return istft_pallas(x, self.n_fft_inv, self.hop_inv, self.w_inv)


def istft_ref_numpy(x, n_fft, hop, window):
    """Pure-NumPy reference of the module forward (pocketfft irfft, same as torch CPU)."""
    x = np.asarray(x)
    window = np.asarray(window, dtype=np.float64)
    t, f = x.shape[-2], x.shape[-1]
    sh = x.shape[:-2]
    spec = x.reshape(-1, t, f).transpose(0, 2, 1)                 # (B, f, t)
    spec = np.pad(spec, ((0, 0), (0, 0), (0, 1)))                 # F.pad(..., (0,1))
    n_frames = spec.shape[-1]
    frames = np.fft.irfft(spec, n=n_fft, axis=1) * math.sqrt(n_fft)   # normalized=True
    frames = frames * window[None, :, None]
    L = n_fft + hop * (n_frames - 1)
    y = np.zeros((spec.shape[0], L))
    env = np.zeros((L,))
    for fr in range(n_frames):
        y[:, fr * hop:fr * hop + n_fft] += frames[:, :, fr]
        env[fr * hop:fr * hop + n_fft] += window ** 2
    start = n_fft // 2
    y = y[:, start:L - n_fft // 2] / env[start:L - n_fft // 2]
    if x.ndim > 2:
        y = y.reshape(*sh, y.shape[-1])
    return y.astype(np.float32)


if __name__ == "__main__":
    n_fft, hop = 32, 8
    t, f = 12, n_fft // 2 + 1          # (frames, freq bins) = (12, 17)
    sh = (2, 3)

    # deterministic periodic Hann window (the registered buffer)
    window = 0.5 * (1.0 - jnp.cos(2.0 * jnp.pi * jnp.arange(n_fft) / n_fft))
    window = window.astype(jnp.float32)

    key = jax.random.PRNGKey(0)
    kr, ki = jax.random.split(key)
    xr = jax.random.normal(kr, (*sh, t, f), dtype=jnp.float32)
    xi = jax.random.normal(ki, (*sh, t, f), dtype=jnp.float32)
    # DC / Nyquist bins of a real-signal STFT are purely real
    xi = xi.at[..., 0].set(0.0).at[..., -1].set(0.0)
    x = (xr + 1j * xi).astype(jnp.complex64)

    model = Istft(n_fft, hop, window)
    out = jax.block_until_ready(model(x))

    ref = istft_ref_numpy(np.asarray(x), n_fft, hop, np.asarray(window))
    assert out.shape == (*sh, hop * t), out.shape
    # bf16 MXU inputs with f32 accumulation -> slightly looser tolerance than pure f32.
    np.testing.assert_allclose(np.asarray(out), ref, rtol=3e-2, atol=3e-2)
    print("KERNEL_OK")
</pallas_src>

<mosaic_0001>
module attributes {stable_mosaic.version = 11 : i64} {
  func.func @kernel(%arg0: i32, %arg1: memref<3x16x48xbf16, #tpu.memory_space<vmem>>, %arg2: memref<48x32xbf16, #tpu.memory_space<vmem>>, %arg3: memref<12x8xf32, #tpu.memory_space<vmem>>, %arg4: memref<3x12x8xf32, #tpu.memory_space<vmem>>) attributes {dimension_semantics = [#tpu.dimension_semantics<parallel>], iteration_bounds = array<i64: 2>, scalar_prefetch = 0 : i64, scratch_operands = 0 : i64, tpu.core_type = #tpu.core_type<tc>, window_params = [{transform_indices = @transform_0, window_bounds = array<i64: 3, 16, 48>}, {pipeline_mode = #tpu.pipeline_mode<synchronous>, transform_indices = @transform_1, window_bounds = array<i64: 48, 32>}, {pipeline_mode = #tpu.pipeline_mode<synchronous>, transform_indices = @transform_2, window_bounds = array<i64: 12, 8>}, {transform_indices = @transform_3, window_bounds = array<i64: 3, 12, 8>}]} {
    %c0 = arith.constant 0 : index
    %c0_0 = arith.constant 0 : index
    %c0_1 = arith.constant 0 : index
    %0 = vector.load %arg1[%c0, %c0_0, %c0_1] : memref<3x16x48xbf16, #tpu.memory_space<vmem>>, vector<3x16x48xbf16>
    %1 = vector.shape_cast %0 : vector<3x16x48xbf16> to vector<48x48xbf16>
    %c0_2 = arith.constant 0 : index
    %c0_3 = arith.constant 0 : index
    %2 = vector.load %arg2[%c0_2, %c0_3] : memref<48x32xbf16, #tpu.memory_space<vmem>>, vector<48x32xbf16>
    %cst = arith.constant dense<0.000000e+00> : vector<48x32xf32>
    %3 = tpu.matmul %1, %2, %cst {dimension_numbers = #tpu.dot_dimension_numbers<[1], [0], [0], [1], [0, 0, 1, 1], [], []>} : vector<48x48xbf16>, vector<48x32xbf16>, vector<48x32xf32> -> vector<48x32xf32>
    %4 = vector.shape_cast %3 : vector<48x32xf32> to vector<3x16x32xf32>
    %5 = vector.extract_strided_slice %4 {offsets = [0, 4, 0], sizes = [3, 12, 8], strides = [1, 1, 1]} : vector<3x16x32xf32> to vector<3x12x8xf32>
    %6 = vector.extract_strided_slice %4 {offsets = [0, 3, 8], sizes = [3, 12, 8], strides = [1, 1, 1]} : vector<3x16x32xf32> to vector<3x12x8xf32>
    %7 = arith.addf %5, %6 : vector<3x12x8xf32>
    %8 = vector.extract_strided_slice %4 {offsets = [0, 2, 16], sizes = [3, 12, 8], strides = [1, 1, 1]} : vector<3x16x32xf32> to vector<3x12x8xf32>
    %9 = arith.addf %7, %8 : vector<3x12x8xf32>
    %10 = vector.extract_strided_slice %4 {offsets = [0, 1, 24], sizes = [3, 12, 8], strides = [1, 1, 1]} : vector<3x16x32xf32> to vector<3x12x8xf32>
    %11 = arith.addf %9, %10 : vector<3x12x8xf32>
    %c0_4 = arith.constant 0 : index
    %c0_5 = arith.constant 0 : index
    %12 = vector.load %arg3[%c0_4, %c0_5] : memref<12x8xf32, #tpu.memory_space<vmem>>, vector<12x8xf32>
    %13 = vector.shape_cast %12 : vector<12x8xf32> to vector<1x12x8xf32>
    %14 = vector.broadcast %13 : vector<1x12x8xf32> to vector<3x12x8xf32>
    %15 = arith.mulf %11, %14 : vector<3x12x8xf32>
    %c0_6 = arith.constant 0 : index
    %c0_7 = arith.constant 0 : index
    %c0_8 = arith.constant 0 : index
    %16 = vector.load %arg4[%c0_6, %c0_7, %c0_8] : memref<3x12x8xf32, #tpu.memory_space<vmem>>, vector<3x12x8xf32>
    tpu.vector_store %arg4[%c0_6, %c0_7, %c0_8], %15 {strides = array<i32>} : memref<3x12x8xf32, #tpu.memory_space<vmem>>, vector<3x12x8xf32>,
    return
  }
  func.func @transform_0(%arg0: i32) -> (i32, i32, i32) {
    %c0_i32 = arith.constant 0 : i32
    %c0_i32_0 = arith.constant 0 : i32
    %c0_i32_1 = arith.constant 0 : i32
    return %arg0, %c0_i32, %c0_i32_0 : i32, i32, i32
  }
  func.func @transform_1(%arg0: i32) -> (i32, i32) {
    %c0_i32 = arith.constant 0 : i32
    %c0_i32_0 = arith.constant 0 : i32
    %c0_i32_1 = arith.constant 0 : i32
    return %c0_i32, %c0_i32_0 : i32, i32
  }
  func.func @transform_2(%arg0: i32) -> (i32, i32) {
    %c0_i32 = arith.constant 0 : i32
    %c0_i32_0 = arith.constant 0 : i32
    %c0_i32_1 = arith.constant 0 : i32
    return %c0_i32, %c0_i32_0 : i32, i32
  }
  func.func @transform_3(%arg0: i32) -> (i32, i32, i32) {
    %c0_i32 = arith.constant 0 : i32
    %c0_i32_0 = arith.constant 0 : i32
    %c0_i32_1 = arith.constant 0 : i32
    return %arg0, %c0_i32, %c0_i32_0 : i32, i32, i32
  }
}

</mosaic_0001>

<llo_original>
// kernel: tpu_custom_call.1
$region0: #{tpu_custom_call.1}
  #allocation0 [shape = 'u32[]', space=smem, size = 0x4, offset = 0x4, fixed_abs, tag = 'smem constant byte address 0x4 - core index']
  #allocation1 [shape = 'u32[144,128]{1,0:T(1,128)}', space=vmem, size = 0x12000, scoped, tag = 'internal scratch']
  %s0 = inlined_call_operand.vmem [shape: bf16[6,16,48], index: 0, kind: input, shape index: {}]
  %s1 = inlined_call_operand.vmem [shape: bf16[48,32], index: 1, kind: input, shape index: {}]
  %s2 = inlined_call_operand.vmem [shape: f32[12,8], index: 2, kind: input, shape index: {}]
  %s3 = inlined_call_operand.vmem [shape: f32[6,12,8], index: 3, kind: output, shape index: {}]
  %s4 = sld [smem:[#allocation0]]
  $region45: #{tpu_custom_call.1} parent=0
    _
  %s6 = ssub.s32 1, %s4
  %s7 = scalar_select 0, %s6, %s4
  loop: start=0, step=1, limit=4
  $region2: #{tpu_custom_call.1} parent=0 // loop_pre_header
    _
  $region3: #{tpu_custom_call.1} parent=0 // loop_header
    %s9 = sphi 0, %s13
    %p10 = scmp.ge.s32.totalorder %s9, 4
    %s19 = sphi 0, %s21
    %s22 = sphi 0, %s19
    %s23 = sphi 0, %s22
    %s39 = sphi 0, %s23
    %s43 = sphi 0, %s43
    %s45 = sphi 0, %s43
    %s46 = sphi 0, %s45
    %s60 = sphi 0, %s46
    %s64 = sphi 0, %s64
    %s66 = sphi 0, %s64
    %s67 = sphi 0, %s66
    %s81 = sphi 0, %s67
    %s87 = sphi 0, %s89
    %s90 = sphi 0, %s87
    %s91 = sphi 0, %s90
    %s107 = sphi 0, %s91
  $region4: #{tpu_custom_call.1} parent=0 // loop_header_branch
    %12 = sbr.rel (%p10) target = $region8
  $region5: #{tpu_custom_call.1} parent=0 // loop_body
    %s14 = ssub.s32 %s9, 1
    %s15 = ssub.s32 %s9, 2
    %s16 = sadd.s32 %s9, 1
    %s17 = ssub.s32 %s9, %s16
    %p18 = scmp.eq.s32.totalorder %s17, 0
    %s20 = sadd.s32 %s19, 1
    %s21 = scalar_select %p18, %s19, %s20
    %p24 = pneg %p18
    %p25 = scmp.eq.s32.totalorder %s9, 1
    %p26 = por %p24, %p25
    %p27 = scmp.ne.s32.totalorder %s19, %s22
    %p28 = scmp.eq.s32.totalorder %s9, 0
    %p29 = por %p27, %p28
    %p30 = scmp.ne.s32.totalorder %s19, %s22
    %p31 = scmp.eq.s32.totalorder %s14, 1
    %p32 = por %p30, %p31
    %p33 = scmp.ne.s32.totalorder %s22, %s23
    %p34 = scmp.eq.s32.totalorder %s14, 0
    %p35 = por %p33, %p34
    %p36 = scmp.ne.s32.totalorder %s22, %s23
    %p37 = scmp.eq.s32.totalorder %s15, 1
    %p38 = por %p36, %p37
    %p40 = scmp.ne.s32.totalorder %s23, %s39
    %p41 = scmp.eq.s32.totalorder %s15, 0
    %p42 = por %p40, %p41
    %s44 = sadd.s32 %s43, 1
    %p47 = scmp.eq.s32.totalorder %s9, 1
    %p48 = scmp.ne.s32.totalorder %s43, %s45
    %p49 = scmp.eq.s32.totalorder %s9, 0
    %p50 = por %p48, %p49
    %p51 = scmp.ne.s32.totalorder %s43, %s45
    %p52 = scmp.eq.s32.totalorder %s14, 1
    %p53 = por %p51, %p52
    %p54 = scmp.ne.s32.totalorder %s45, %s46
    %p55 = scmp.eq.s32.totalorder %s14, 0
    %p56 = por %p54, %p55
    %p57 = scmp.ne.s32.totalorder %s45, %s46
    %p58 = scmp.eq.s32.totalorder %s15, 1
    %p59 = por %p57, %p58
    %p61 = scmp.ne.s32.totalorder %s46, %s60
    %p62 = scmp.eq.s32.totalorder %s15, 0
    %p63 = por %p61, %p62
    %s65 = sadd.s32 %s64, 1
    %p68 = scmp.eq.s32.totalorder %s9, 1
    %p69 = scmp.ne.s32.totalorder %s64, %s66
    %p70 = scmp.eq.s32.totalorder %s9, 0
    %p71 = por %p69, %p70
    %p72 = scmp.ne.s32.totalorder %s64, %s66
    %p73 = scmp.eq.s32.totalorder %s14, 1
    %p74 = por %p72, %p73
    %p75 = scmp.ne.s32.totalorder %s66, %s67
    %p76 = scmp.eq.s32.totalorder %s14, 0
    %p77 = por %p75, %p76
    %p78 = scmp.ne.s32.totalorder %s66, %s67
    %p79 = scmp.eq.s32.totalorder %s15, 1
    %p80 = por %p78, %p79
    %p82 = scmp.ne.s32.totalorder %s67, %s81
    %p83 = scmp.eq.s32.totalorder %s15, 0
    %p84 = por %p82, %p83
    %s85 = ssub.s32 %s9, %s16
    %p86 = scmp.eq.s32.totalorder %s85, 0
    %s88 = sadd.s32 %s87, 1
    %s89 = scalar_select %p86, %s87, %s88
    %p92 = pneg %p86
    %p93 = scmp.eq.s32.totalorder %s9, 1
    %p94 = por %p92, %p93
    %p95 = scmp.ne.s32.totalorder %s87, %s90
    %p96 = scmp.eq.s32.totalorder %s9, 0
    %p97 = por %p95, %p96
    %p98 = scmp.ne.s32.totalorder %s87, %s90
    %p99 = scmp.eq.s32.totalorder %s14, 1
    %p100 = por %p98, %p99
    %p101 = scmp.ne.s32.totalorder %s90, %s91
    %p102 = scmp.eq.s32.totalorder %s14, 0
    %p103 = por %p101, %p102
    %p104 = scmp.ne.s32.totalorder %s90, %s91
    %p105 = scmp.eq.s32.totalorder %s15, 1
    %p106 = por %p104, %p105
    %p108 = scmp.ne.s32.totalorder %s91, %s107
    %p109 = scmp.eq.s32.totalorder %s15, 0
    %p110 = por %p108, %p109
    %p111 = scmp.le.s32.totalorder 1, %s9
    %p112 = scmp.lt.s32.totalorder %s9, 3
    %p113 = pnand %p111, %p112
    %p114 = pneg %p113
    // Predicated region
    $region9: #{tpu_custom_call.1} parent=5 // pred_check
      _
    $region10: #{tpu_custom_call.1} parent=5 // pred_check_branch
      %116 = sbr.rel (%p113) target = $region12
    $region11: #{tpu_custom_call.1} parent=5 // pred_region
      %s117 = ssub.s32 %s9, 1
      // Predicated region
      $region13: #{tpu_custom_call.1} parent=11 // pred_check
        %p118 = pneg %p56
      $region14: #{tpu_custom_call.1} parent=11 // pred_check_branch
        %120 = sbr.rel (%p118) target = $region16
      $region15: #{tpu_custom_call.1} parent=11 // pred_region
        _
      $region16: #{tpu_custom_call.1} parent=11 // pred_fallthru
        _
      // Predicated region
      $region17: #{tpu_custom_call.1} parent=11 // pred_check
        %p121 = pneg %p77
      $region18: #{tpu_custom_call.1} parent=11 // pred_check_branch
        %123 = sbr.rel (%p121) target = $region20
      $region19: #{tpu_custom_call.1} parent=11 // pred_region
        _
      $region20: #{tpu_custom_call.1} parent=11 // pred_fallthru
        _
    $region12: #{tpu_custom_call.1} parent=5 // pred_fallthru
      _
    %p124 = scmp.lt.s32.totalorder %s9, 2
    // Predicated region
    $region21: #{tpu_custom_call.1} parent=5 // pred_check
      %p125 = pneg %p124
    $region22: #{tpu_custom_call.1} parent=5 // pred_check_branch
      %127 = sbr.rel (%p125) target = $region24
    $region23: #{tpu_custom_call.1} parent=5 // pred_region
      // Predicated region
      $region25: #{tpu_custom_call.1} parent=23 // pred_check
        %p128 = pneg %p29
      $region26: #{tpu_custom_call.1} parent=23 // pred_check_branch
        %130 = sbr.rel (%p128) target = $region28
      $region27: #{tpu_custom_call.1} parent=23 // pred_region
        %s131 = smul.u32 3, %s9
        %p132 = scmp.lt.s32.totalorder %s131, 5
        %s133 = scalar_select %p132, %s131, 5
        %s134 = smul.addr %s133, 2
        %s135 = smul.addr %s134, 4
        %s136 = scalar_lea.vmem %s0, %s135
        %s137 = smul.u32 3, %s9
      $region28: #{tpu_custom_call.1} parent=23 // pred_fallthru
        _
    $region24: #{tpu_custom_call.1} parent=5 // pred_fallthru
      _
    %p138 = scmp.le.s32.totalorder 1, %s9
    %p139 = scmp.lt.s32.totalorder %s9, 3
    %p140 = pnand %p138, %p139
    %p141 = pneg %p140
    // Predicated region
    $region29: #{tpu_custom_call.1} parent=5 // pred_check
      _
    $region30: #{tpu_custom_call.1} parent=5 // pred_check_branch
      %143 = sbr.rel (%p140) target = $region32
    $region31: #{tpu_custom_call.1} parent=5 // pred_region
      %s144 = ssub.s32 %s9, 1
      %s145 = smul.u32 3, %s14
      %p146 = scmp.lt.s32.totalorder %s145, 5
      %s147 = scalar_select %p146, %s145, 5
      %s148 = smul.addr %s147, 2
      %s149 = smul.addr %s148, 4
      %s150 = scalar_lea.vmem %s0, %s149
      %p151 = pneg %p35
      %p152 = pneg %p32
      %p153 = pneg %p56
      %p154 = pneg %p53
      %p155 = pneg %p77
      %p156 = pneg %p74
      %p157 = pneg %p103
      %p158 = pneg %p100
      %s159 = smul.u32 3, %s14
      %p160 = scmp.lt.s32.totalorder %s159, 5
      %s161 = scalar_select %p160, %s159, 5
      %s162 = smul.addr %s161, 2
      %s163 = smul.addr %s162, 8
      %s164 = scalar_lea.vmem %s3, %s163
      %s165 = smul.u32 3, %s14
      %p166 = scmp.lt.s32.totalorder %s165, 5
      %s167 = scalar_select %p166, %s165, 5
      %s168 = smul.addr %s167, 2
      %s169 = smul.addr %s168, 4
      %s170 = scalar_lea.vmem %s0, %s169
      %s171 = smul.u32 3, %s14
      %s172 = smul.u32 3, %s14
      %p173 = scmp.lt.s32.totalorder %s172, 5
      %s174 = scalar_select %p173, %s172, 5
      %s175 = smul.addr %s174, 2
      %s176 = smul.addr %s175, 8
      %s177 = scalar_lea.vmem %s3, %s176
      %s178 = smul.u32 3, %s14
      %v180 = vld [vmem:[%s170] sm:$0xf]
      %v181 = vld [vmem:[%s170 + $0x4] sm:$0xf]
      %v182 = vld [vmem:[%s170 + $0x8] sm:$0xf]
      %v183 = vld [vmem:[%s170 + $0xc] sm:$0xf]
      %v184 = vld [vmem:[%s170 + $0x10] sm:$0xf]
      %v185 = vld [vmem:[%s170 + $0x14] sm:$0xf]
      %v186 = vld [vmem:[%s1] sm:$0xf]
      %v187 = vld [vmem:[%s1 + $0x4] sm:$0xf]
      %v188 = vld [vmem:[%s1 + $0x8] sm:$0xf]
      %v189 = vld [vmem:[%s1 + $0xc] sm:$0xf]
      %v190 = vld [vmem:[%s1 + $0x10] sm:$0xf]
      %v191 = vld [vmem:[%s1 + $0x14] sm:$0xf]
      %v198 = vunpack.c.l.b16 %v180
      %v199 = vunpack.c.l.b16 %v181
      %v200 = vunpack.c.l.b16 %v182
      %v201 = vunpack.c.l.b16 %v183
      %v202 = vunpack.c.l.b16 %v184
      %v203 = vunpack.c.l.b16 %v185
      %v204 = vpack.c.b16 %v199, %v198
      %v205 = vpack.c.b16 %v201, %v200
      %v206 = vpack.c.b16 %v203, %v202
      %v213 = vunpack.c.l.b16 %v186
      %v214 = vunpack.c.l.b16 %v187
      %v215 = vunpack.c.l.b16 %v188
      %v216 = vunpack.c.l.b16 %v189
      %v217 = vunpack.c.l.b16 %v190
      %v218 = vunpack.c.l.b16 %v191
      %v219 = vpack.c.b16 %v214, %v213
      %v220 = vpack.c.b16 %v216, %v215
      %v221 = vpack.c.b16 %v218, %v217
      %vm225 = vcmask 392192
      %v227 = vsel %vm225, %v204, 0
      %v230 = vsel %vm225, %v205, 0
      %v233 = vsel %vm225, %v206, 0
      %235 = vmatprep.subr.bf16.mxu0 0
      %236 = vmatpush1.bf16.msra.mxu0 %v219
      %237 = vmatprep.subr.bf16.mxu0 0
      %238 = vmatpush1.bf16.msra.mxu0 %v220
      %239 = vmatprep.subr.bf16.mxu0 0
      %240 = vmatpush1.bf16.msra.mxu0 %v221
      %241 = vmatprep.subr.bf16.mxu0 0
      %242 = vmatpush1.bf16.msra.mxu0 0
      %243 = vmatprep.subr.bf16.mxu0 0
      %244 = vmatpush1.bf16.msra.mxu0 0
      %245 = vmatprep.subr.bf16.mxu0 0
      %246 = vmatpush1.bf16.msra.mxu0 0
      %247 = vmatprep.subr.bf16.mxu0 0
      %248 = vmatpush1.bf16.msra.mxu0 0
      %249 = vmatprep.subr.bf16.mxu0 0
      %250 = vmatpush1.bf16.msra.mxu0 0
      %251 = vmatprep.subr.bf16.mxu0 0
      %252 = vmatpush1.bf16.msra.mxu0 0
      %253 = vmatprep.subr.bf16.mxu0 0
      %254 = vmatpush1.bf16.msra.mxu0 0
      %255 = vmatprep.subr.bf16.mxu0 0
      %256 = vmatpush1.bf16.msra.mxu0 0
      %257 = vmatprep.subr.bf16.mxu0 0
      %258 = vmatpush1.bf16.msra.mxu0 0
      %259 = vmatprep.subr.bf16.mxu0 0
      %260 = vmatpush1.bf16.msra.mxu0 0
      %261 = vmatprep.subr.bf16.mxu0 0
      %262 = vmatpush1.bf16.msra.mxu0 0
      %263 = vmatprep.subr.bf16.mxu0 0
      %264 = vmatpush1.bf16.msra.mxu0 0
      %265 = vmatprep.subr.bf16.mxu0 0
      %266 = vmatpush1.bf16.msra.mxu0 0
      %267 = vmatprep.mubr.bf16.mxu0 0
      %268 = vmatmul.mubr.bf16.gmra.mrb[0].mxu0 %v227
      %v269 = vpop.f32.mrb[0].mxu0
      %v270 = vadd.f32 0.0, %v269
      %v271 = vpop.f32.mrb[0].mxu0
      %v272 = vpop.f32.mrb[0].mxu0
      %v273 = vadd.f32 0.0, %v272
      %v274 = vpop.f32.mrb[0].mxu0
      %275 = vmatprep.mubr.bf16.mxu0 0
      %276 = vmatmul.mubr.bf16.gmra.mrb[0].mxu0 %v230
      %v277 = vpop.f32.mrb[0].mxu0
      %v278 = vadd.f32 0.0, %v277
      %v279 = vpop.f32.mrb[0].mxu0
      %v280 = vpop.f32.mrb[0].mxu0
      %v281 = vadd.f32 0.0, %v280
      %v282 = vpop.f32.mrb[0].mxu0
      %283 = vmatprep.mubr.bf16.mxu0 0
      %284 = vmatmul.mubr.bf16.gmra.mrb[0].mxu0 %v233
      %v285 = vpop.f32.mrb[0].mxu0
      %v286 = vadd.f32 0.0, %v285
      %v287 = vpop.f32.mrb[0].mxu0
      %v288 = vpop.f32.mrb[0].mxu0
      %v289 = vadd.f32 0.0, %v288
      %v290 = vpop.f32.mrb[0].mxu0
      %291 = vdwg.mxu0
      %vm298 = vcmask 1040384
      %v299 = vrot.slane %v270, 7
      %v300 = vrot.slane %v273, 7
      %v301 = vsel %vm298, %v299, %v300
      %v302 = vrot.slane %v278, 7
      %v303 = vrot.slane %v281, 7
      %v304 = vsel %vm298, %v302, %v303
      %v305 = vrot.slane %v286, 7
      %v306 = vrot.slane %v289, 7
      %v307 = vsel %vm298, %v305, %v306
      %308 = vrot.lane.b32.xlu0 %v299, 120
      %v309 = vpop.permute.xlu0 %308
      %310 = vrot.lane.b32.xlu0 %v301, 120
      %v311 = vpop.permute.xlu0 %310
      %312 = vrot.lane.b32.xlu0 %v302, 120
      %v313 = vpop.permute.xlu0 %312
      %314 = vrot.lane.b32.xlu0 %v304, 120
      %v315 = vpop.permute.xlu0 %314
      %316 = vrot.lane.b32.xlu0 %v305, 120
      %v317 = vpop.permute.xlu0 %316
      %318 = vrot.lane.b32.xlu0 %v307, 120
      %v319 = vpop.permute.xlu0 %318
      %v326 = vadd.f32 %v270, %v309
      %v327 = vadd.f32 %v273, %v311
      %v328 = vadd.f32 %v278, %v313
      %v329 = vadd.f32 %v281, %v315
      %v330 = vadd.f32 %v286, %v317
      %v331 = vadd.f32 %v289, %v319
      %vm332 = vcmask 1041408
      %v333 = vrot.slane %v270, 6
      %v334 = vrot.slane %v273, 6
      %v335 = vsel %vm332, %v333, %v334
      %v336 = vrot.slane %v278, 6
      %v337 = vrot.slane %v281, 6
      %v338 = vsel %vm332, %v336, %v337
      %v339 = vrot.slane %v286, 6
      %v340 = vrot.slane %v289, 6
      %v341 = vsel %vm332, %v339, %v340
      %342 = vrot.lane.b32.xlu0 %v333, 112
      %v343 = vpop.permute.xlu0 %342
      %344 = vrot.lane.b32.xlu0 %v335, 112
      %v345 = vpop.permute.xlu0 %344
      %346 = vrot.lane.b32.xlu0 %v336, 112
      %v347 = vpop.permute.xlu0 %346
      %348 = vrot.lane.b32.xlu0 %v338, 112
      %v349 = vpop.permute.xlu0 %348
      %350 = vrot.lane.b32.xlu0 %v339, 112
      %v351 = vpop.permute.xlu0 %350
      %352 = vrot.lane.b32.xlu0 %v341, 112
      %v353 = vpop.permute.xlu0 %352
      %v360 = vadd.f32 %v326, %v343
      %v361 = vadd.f32 %v327, %v345
      %v362 = vadd.f32 %v328, %v347
      %v363 = vadd.f32 %v329, %v349
      %v364 = vadd.f32 %v330, %v351
      %v365 = vadd.f32 %v331, %v353
      %vm366 = vcmask 1042432
      %v367 = vrot.slane %v270, 5
      %v368 = vrot.slane %v273, 5
      %v369 = vsel %vm366, %v367, %v368
      %v370 = vrot.slane %v278, 5
      %v371 = vrot.slane %v281, 5
      %v372 = vsel %vm366, %v370, %v371
      %v373 = vrot.slane %v286, 5
      %v374 = vrot.slane %v289, 5
      %v375 = vsel %vm366, %v373, %v374
      %376 = vrot.lane.b32.xlu0 %v367, 104
      %v377 = vpop.permute.xlu0 %376
      %378 = vrot.lane.b32.xlu0 %v369, 104
      %v379 = vpop.permute.xlu0 %378
      %380 = vrot.lane.b32.xlu0 %v370, 104
      %v381 = vpop.permute.xlu0 %380
      %382 = vrot.lane.b32.xlu0 %v372, 104
      %v383 = vpop.permute.xlu0 %382
      %384 = vrot.lane.b32.xlu0 %v373, 104
      %v385 = vpop.permute.xlu0 %384
      %386 = vrot.lane.b32.xlu0 %v375, 104
      %v387 = vpop.permute.xlu0 %386
      %v394 = vadd.f32 %v360, %v377
      %v395 = vadd.f32 %v361, %v379
      %v396 = vadd.f32 %v362, %v381
      %v397 = vadd.f32 %v363, %v383
      %v398 = vadd.f32 %v364, %v385
      %v399 = vadd.f32 %v365, %v387
      %v400 = vld [vmem:[%s2] sm:$0xff]
      %v401 = vld [vmem:[%s2 + $0x8] sm:$0xf]
      %vm404 = vcmask 1043456
      %v405 = vrot.slane %v400, 4
      %v406 = vrot.slane %v401, 4
      %v407 = vsel %vm404, %v405, %v406
      %v410 = vmul.f32 %v394, %v405
      %v411 = vmul.f32 %v395, %v407
      %v412 = vmul.f32 %v396, %v405
      %v413 = vmul.f32 %v397, %v407
      %v414 = vmul.f32 %v398, %v405
      %v415 = vmul.f32 %v399, %v407
      %vm416 = vcmask 64516
      %417 = vst.msk [vmem:[%s177 - $0x4] sm:$0xf0] %vm416, %v410
      %vm418 = vcmask 64512
      %419 = vst.msk [vmem:[%s177 + $0x4] sm:$0xff] %vm418, %v411
      %420 = vst.msk [vmem:[%s177 + $0xc] sm:$0xf0] %vm416, %v412
      %421 = vst.msk [vmem:[%s177 + $0x14] sm:$0xff] %vm418, %v413
      %422 = vst.msk [vmem:[%s177 + $0x1c] sm:$0xf0] %vm416, %v414
      %423 = vst.msk [vmem:[%s177 + $0x24] sm:$0xff] %vm418, %v415
      %s424 = smul.u32 3, %s14
      %p425 = scmp.lt.s32.totalorder %s424, 5
      %s426 = scalar_select %p425, %s424, 5
      %s427 = smul.addr %s426, 2
      %s428 = smul.addr %s427, 8
      %s429 = scalar_lea.vmem %s3, %s428
      // Predicated region
      $region33: #{tpu_custom_call.1} parent=31 // pred_check
        %p430 = pneg %p100
      $region34: #{tpu_custom_call.1} parent=31 // pred_check_branch
        %432 = sbr.rel (%p430) target = $region36
      $region35: #{tpu_custom_call.1} parent=31 // pred_region
        %s433 = smul.u32 3, %s14
      $region36: #{tpu_custom_call.1} parent=31 // pred_fallthru
        _
    $region32: #{tpu_custom_call.1} parent=5 // pred_fallthru
      _
    %p434 = scmp.le.s32.totalorder 2, %s9
    // Predicated region
    $region37: #{tpu_custom_call.1} parent=5 // pred_check
      %p435 = pneg %p434
    $region38: #{tpu_custom_call.1} parent=5 // pred_check_branch
      %437 = sbr.rel (%p435) target = $region40
    $region39: #{tpu_custom_call.1} parent=5 // pred_region
      %s438 = ssub.s32 %s9, 2
      // Predicated region
      $region41: #{tpu_custom_call.1} parent=39 // pred_check
        %p439 = pneg %p106
      $region42: #{tpu_custom_call.1} parent=39 // pred_check_branch
        %441 = sbr.rel (%p439) target = $region44
      $region43: #{tpu_custom_call.1} parent=39 // pred_region
        %s442 = smul.u32 3, %s15
        %p443 = scmp.lt.s32.totalorder %s442, 5
        %s444 = scalar_select %p443, %s442, 5
        %s445 = smul.addr %s444, 2
        %s446 = smul.addr %s445, 8
        %s447 = scalar_lea.vmem %s3, %s446
      $region44: #{tpu_custom_call.1} parent=39 // pred_fallthru
        _
    $region40: #{tpu_custom_call.1} parent=5 // pred_fallthru
      _
  $region6: #{tpu_custom_call.1} parent=0 // loop_footer
    %s13 = sadd.s32 1, %s9
  $region7: #{tpu_custom_call.1} parent=0 // loop_footer_branch
    %8 = sbr.rel target = $region3
  $region8: #{tpu_custom_call.1} parent=0 // loop_exit
    _

</llo_original>
